<compile_context>
chip_gen: v7x
topology: tpu7x:2x2x1
jax: 0.10.0
libtpu: 0.0.40
codegen_flags: <defaults>
</compile_context>

<pallas_src>
import jax
import jax.numpy as jnp
from jax.experimental import pallas as pl
from jax.experimental.pallas import tpu as pltpu


def _resolve_view_shape(total, dim):
    """Replicate torch.Tensor.view shape inference (a single -1 allowed)."""
    dim = tuple(int(d) for d in dim)
    if dim.count(-1) > 1:
        raise ValueError("only one dimension can be inferred (-1)")
    if -1 in dim:
        known = 1
        for d in dim:
            if d != -1:
                known *= d
        if known == 0 or total % known != 0:
            raise ValueError(f"shape {dim} is invalid for input of size {total}")
        dim = tuple(total // known if d == -1 else d for d in dim)
    prod = 1
    for d in dim:
        prod *= d
    if prod != total:
        raise ValueError(f"shape {dim} is invalid for input of size {total}")
    return dim


def _dma_copy_kernel(x_hbm, o_hbm, sem):
    # Direct HBM -> HBM copy: one DMA descriptor, no VMEM/vreg round-trip.
    cp = pltpu.make_async_copy(x_hbm, o_hbm, sem)
    cp.start()
    cp.wait()


def _materialized_copy(x):
    """Opt-in Pallas path: materialize a fresh buffer via HBM->HBM DMA."""
    itemsize = jnp.dtype(x.dtype).itemsize
    total = int(x.size)
    return pl.pallas_call(
        _dma_copy_kernel,
        out_shape=jax.ShapeDtypeStruct(x.shape, x.dtype),
        in_specs=[pl.BlockSpec(memory_space=pl.ANY)],
        out_specs=pl.BlockSpec(memory_space=pl.ANY),
        scratch_shapes=[pltpu.SemaphoreType.DMA(())],
        cost_estimate=pl.CostEstimate(
            flops=0, transcendentals=0, bytes_accessed=2 * total * itemsize
        ),
    )(x)


def pallas_view(x, dim, *, force_copy=False):
    """Equivalent of View(dim)(x) == x.view(*dim).

    Default: metadata-only reshape (matches torch .view semantics exactly,
    zero HBM traffic).  `force_copy=True` routes through the Pallas HBM->HBM
    DMA kernel and then applies the free shape reinterpretation.
    """
    total = int(x.size)
    out_shape = _resolve_view_shape(total, dim)

    if not force_copy or total == 0:
        # .view is metadata-only; this is the semantically faithful fast path.
        return jnp.reshape(x, out_shape)

    copied = _materialized_copy(x)
    return copied.reshape(out_shape)


class View:
    """JAX/Pallas mirror of the PyTorch View module."""

    def __init__(self, dim, force_copy=False):
        self.dim = dim
        self.force_copy = force_copy

    def __call__(self, x, *args):
        return pallas_view(x, self.dim, force_copy=self.force_copy)


if __name__ == "__main__":
    key = jax.random.PRNGKey(0)
    # Small NCHW-like input consistent with typical usage of View.
    x = jax.random.normal(key, (2, 4, 16, 16), dtype=jnp.float32)  # 2048 elems

    # Default (metadata-only) path: View(dim=(2, -1)).
    y = jax.block_until_ready(View(dim=(2, -1))(x))
    ref = x.reshape(2, -1)
    assert y.shape == ref.shape, (y.shape, ref.shape)
    assert y.dtype == ref.dtype
    assert bool(jnp.array_equal(y, ref))

    # Opt-in Pallas HBM->HBM DMA path (exercises the kernel on TPU).
    y_k = jax.block_until_ready(View(dim=(2, -1), force_copy=True)(x))
    assert y_k.shape == ref.shape
    assert bool(jnp.array_equal(y_k, ref))

    # Fully-specified target shape (8 * 4 * 64 == 2048), kernel path.
    y2 = jax.block_until_ready(View(dim=(8, 4, 64), force_copy=True)(x))
    assert y2.shape == (8, 4, 64)
    assert bool(jnp.array_equal(y2, x.reshape(8, 4, 64)))

    # Odd-sized input: DMA copy has no (8,128) tiling constraint.
    x3 = jax.random.normal(key, (3, 5, 7), dtype=jnp.float32)  # 105 elems
    y3 = jax.block_until_ready(View(dim=(-1,))(x3))
    assert y3.shape == (105,)
    assert bool(jnp.array_equal(y3, x3.reshape(-1)))
    y3_k = jax.block_until_ready(View(dim=(-1,), force_copy=True)(x3))
    assert bool(jnp.array_equal(y3_k, x3.reshape(-1)))

    print("KERNEL_OK")
</pallas_src>

<mosaic_0001>
module attributes {stable_mosaic.version = 11 : i64} {
  func.func @_dma_copy_kernel(%arg0: memref<2x4x16x16xf32, #tpu.memory_space<any>>, %arg1: memref<2x4x16x16xf32, #tpu.memory_space<any>>, %arg2: memref<!tpu.dma_semaphore, #tpu.memory_space<semaphore_mem>>) attributes {dimension_semantics = [], scalar_prefetch = 0 : i64, scratch_operands = 1 : i64, tpu.core_type = #tpu.core_type<tc>} {
    tpu.enqueue_dma source(%arg0 : memref<2x4x16x16xf32, #tpu.memory_space<any>>) target(%arg1 : memref<2x4x16x16xf32, #tpu.memory_space<any>>) target_semaphore(%arg2 : memref<!tpu.dma_semaphore, #tpu.memory_space<semaphore_mem>>)
    tpu.wait_dma2 semaphore(%arg2 : memref<!tpu.dma_semaphore, #tpu.memory_space<semaphore_mem>>) src(%arg0 : memref<2x4x16x16xf32, #tpu.memory_space<any>>) dst(%arg1 : memref<2x4x16x16xf32, #tpu.memory_space<any>>)
    return
  }
}

</mosaic_0001>

<llo_original>
// kernel: tpu_custom_call.1
$region0: #{tpu_custom_call.1}
  #allocation0 [shape = 'u32[]', space=smem, size = 0x4, offset = 0x4, fixed_abs, tag = 'smem constant byte address 0x4 - core index']
  #allocation1 [shape = 'u32[144,128]{1,0:T(1,128)}', space=vmem, size = 0x12000, scoped, tag = 'internal scratch']
  #allocation2 [shape = 's32[1]{0}', space=sflag, size = 0x4, scoped, tag = 'scratch operand']
  #allocation3 [shape = 's32[]', space=sflag, size = 0x4, offset = 0, fixed_abs, tag = 'sflag constant byte address 0x0 - dummy sync flag']
  #allocation4 [shape = 'u32[0]{0}', space=smem, size = 0, offset = 0, fixed_abs, tag = 'smem constant byte address 0x0 - null']
  %s0 = inlined_call_operand.hbm [shape: f32[2,4,16,16], index: 0, kind: input, shape index: {}]
  %s1 = inlined_call_operand.hbm [shape: f32[2,4,16,16], index: 1, kind: output, shape index: {}]
  %s2 = sld [smem:[#allocation0]]
  $region2: #{tpu_custom_call.1} parent=0
    _
  %s4 = ssub.s32 1, %s2
  %s5 = scalar_select 0, %s4, %s2
  %s7 = sshll.u32 1, 14
  %s8 = sxor.u32 4294967295, %s7
  %s11 = sshll.u32 3, 24
  %s12 = sxor.u32 4294967295, %s11
  %s13 = sand.u32 0, %s12
  %s15 = sor.u32 %s13, 0
  %18 = dma.general %s0, 2048, %s1, [#allocation2], [#allocation3], [#allocation4], %s15, 0
  %s19 = smul.u32 2, 4
  %s20 = smul.u32 %s19, 16
  %s21 = smul.u32 %s20, 1
  %s22 = sshll.u32 %s21, 4
  %23 = dma.done [#allocation2], %s22
  %24 = vsyncmov [#allocation2]
  %s25 = vpop.sfrf %24
  %p26 = scmp.eq.s32.totalorder %s25, 0
  %p27 = pneg %p26
  %29 = shalt.err (%p27)

</llo_original>
